<compile_context>
chip_gen: v7x
topology: tpu7x:2x2x1
jax: 0.10.0
libtpu: 0.0.40
codegen_flags: <defaults>
</compile_context>

<pallas_src>
import numpy as np
import jax
import jax.numpy as jnp
from jax import lax
from jax.experimental import pallas as pl
from jax.experimental.pallas import tpu as pltpu


def _round_up(x, m):
    return (x + m - 1) // m * m


# --------------------------------------------------------------------------
# Pallas kernel
# --------------------------------------------------------------------------
def make_kernel(stride, Cin_p, Cout_p, W_row, L_pad, L_blk, max_off, mxu_bf16):
    """Per-batch-element kernel (grid=(N,)).

    stride==1 refs:
      h_ref   : (1, Cin_p, L_flat)     zero-padded input, spatial flattened
                                       with row stride W_row (= W + 4)
      wdw_ref : (Cin_p, 25)            depthwise taps (bias folded into pw)
      wpw_ref : (Cout_p, Cin_p + 1)    pointwise weights | effective bias
      o_ref   : (1, Cout_p, L_pad)     output in the same wide flat layout

    stride==2: h_ref is (1, 4, Cin_p, L_flat): four space-to-depth parity
    groups g[r*2+s][c, a, b] = hpad[c, 2a+r, 2b+s], row stride W_row=(W+4)//2.
    """

    def kernel(h_ref, wdw_ref, wpw_ref, o_ref):
        wdw = wdw_ref[...]                                    # (Cin_p, 25)
        w_pw = wpw_ref[:, 0:Cin_p]                            # (Cout_p, Cin_p)
        b_pw = wpw_ref[:, Cin_p:Cin_p + 1]                    # (Cout_p, 1) folded bias
        if mxu_bf16:
            w_pw = w_pw.astype(jnp.bfloat16)

        # Static chunk loop over the flat spatial axis: every tap offset is a
        # compile-time constant and the (Cin_p, cur) accumulator stays in vregs.
        for base in range(0, L_pad, L_blk):
            cur = min(L_blk, L_pad - base)
            wlen = cur + max_off                              # chunk + halo

            if stride == 1:
                win = h_ref[0, :, base:base + wlen]           # (Cin_p, wlen)

                def tap(kh, kw, _w=win, _c=cur):
                    off = kh * W_row + kw                     # pure flat shift
                    return _w[:, off:off + _c]

                # residual: x[i,j] == hpad[i+2, j+2] -> shift 2*W_row+2
                res = win[:, 2 * W_row + 2:2 * W_row + 2 + cur]
            else:
                wins = [h_ref[0, i, :, base:base + wlen] for i in range(4)]

                def tap(kh, kw, _w=wins, _c=cur):
                    a, r = divmod(kh, 2)
                    b, s = divmod(kw, 2)
                    off = a * W_row + b
                    return _w[r * 2 + s][:, off:off + _c]

                # 2x2 max-pool of the original x, expressed on the parity groups
                res = jnp.maximum(
                    jnp.maximum(wins[3][:, 0:cur], wins[2][:, 1:1 + cur]),
                    jnp.maximum(wins[1][:, W_row:W_row + cur],
                                wins[0][:, W_row + 1:W_row + 1 + cur]))

            # ---- depthwise 5x5: 25 lane-shifted VPU MACs (acc init from tap 0,
            # depthwise bias folded into the pointwise bias on the host) ----
            acc = tap(0, 0) * wdw[:, 0:1]
            for kh in range(5):
                for kw in range(5):
                    if kh == 0 and kw == 0:
                        continue
                    t = kh * 5 + kw
                    acc = acc + tap(kh, kw) * wdw[:, t:t + 1]

            # ---- pointwise 1x1: one small MXU matmul ----
            acc_mx = acc.astype(jnp.bfloat16) if mxu_bf16 else acc
            out = jnp.dot(w_pw, acc_mx,
                          preferred_element_type=jnp.float32) + b_pw

            # ---- residual add + ReLU: split sublane-aligned, lane-dense stores
            # (channel zero-pad without materializing a zero block/concat) ----
            o_ref[0, 0:Cin_p, base:base + cur] = jnp.maximum(
                out[0:Cin_p, :] + res, 0.0).astype(o_ref.dtype)
            if Cout_p > Cin_p:
                o_ref[0, Cin_p:Cout_p, base:base + cur] = jnp.maximum(
                    out[Cin_p:, :], 0.0).astype(o_ref.dtype)

    return kernel


# --------------------------------------------------------------------------
# Glue: padding, flattening, (packed) space-to-depth, pallas_call wiring
# --------------------------------------------------------------------------
def res_module_forward(x_nchw, params, stride, *, mxu_bf16=False,
                       return_wide=False):
    """Pallas implementation of ResModule.forward. x_nchw: (N, Cin, H, W)."""
    w_dw_t, b_dw, w_pw_t, b_pw = params            # torch-shaped parameters
    N, Cin, H, W = x_nchw.shape
    Cout = w_pw_t.shape[0]
    assert Cout >= Cin, "residual add requires out_channels >= in_channels"
    Cin_p = _round_up(Cin, 8)
    Cout_p = _round_up(Cout, 8)
    x = x_nchw.astype(jnp.float32)

    if stride == 1:
        Ho, Wo = H, W
        W_row = W + 4
        hp = jnp.pad(x, ((0, 0), (0, Cin_p - Cin), (2, 2), (2, 2)))
        h_flat = hp.reshape(N, Cin_p, (H + 4) * W_row)
        max_off = 4 * W_row + 4
        in_block = lambda Lf: (1, Cin_p, Lf)
        in_index = lambda n: (n, 0, 0)
    else:
        # TODO(synk): odd H/W with stride==2 (PyTorch allows it) is not handled.
        assert stride == 2 and H % 2 == 0 and W % 2 == 0
        Ho, Wo = H // 2, W // 2
        Hg, Wg = (H + 4) // 2, (W + 4) // 2
        W_row = Wg
        # F.pad(x, (1,2,1,2)) plus one extra (never read) row/col to make even.
        hp = jnp.pad(x, ((0, 0), (0, Cin_p - Cin), (1, 3), (1, 3)))
        grp = hp.reshape(N, Cin_p, Hg, 2, Wg, 2).transpose(0, 3, 5, 1, 2, 4)
        h_flat = grp.reshape(N, 4, Cin_p, Hg * Wg)
        max_off = 2 * W_row + 2
        in_block = lambda Lf: (1, 4, Cin_p, Lf)
        in_index = lambda n: (n, 0, 0, 0)

    L_pad = _round_up(Ho * W_row, 128)             # lane-dense output length
    L_data = h_flat.shape[-1]
    # Every chunk reads [base, base + cur + max_off) with base + cur <= L_pad,
    # so L_flat >= L_pad + max_off keeps all tap reads in (zero-padded) bounds.
    L_flat = _round_up(max(L_data, L_pad + max_off), 128)
    if L_flat > L_data:
        pads = [(0, 0)] * (h_flat.ndim - 1) + [(0, L_flat - L_data)]
        h_flat = jnp.pad(h_flat, pads)

    # Consolidated parameters.  Depthwise bias is folded into the pointwise
    # bias (the 1x1 conv is linear): b_eff = b_pw + W_pw @ b_dw.
    wdw = jnp.zeros((Cin_p, 25), jnp.float32)
    wdw = wdw.at[:Cin, :].set(w_dw_t[:, 0].reshape(Cin, 25).astype(jnp.float32))
    w_pw2 = w_pw_t[:, :, 0, 0].astype(jnp.float32)
    b_eff = b_pw.astype(jnp.float32) + w_pw2 @ b_dw.astype(jnp.float32)
    wpw = jnp.zeros((Cout_p, Cin_p + 1), jnp.float32)
    wpw = wpw.at[:Cout, :Cin].set(w_pw2)
    wpw = wpw.at[:Cout, Cin_p].set(b_eff)

    L_blk = min(512, L_pad)                        # register-resident acc chunks
    kernel = make_kernel(stride, Cin_p, Cout_p, W_row, L_pad, L_blk, max_off,
                         mxu_bf16)

    cost = pl.CostEstimate(
        flops=int(2 * N * Ho * Wo * Cin * (25 + Cout)),
        transcendentals=0,
        bytes_accessed=int(h_flat.size * 4 + N * Cout_p * L_pad * 4
                           + wdw.size * 4 + wpw.size * 4))

    out_wide = pl.pallas_call(
        kernel,
        out_shape=jax.ShapeDtypeStruct((N, Cout_p, L_pad), x.dtype),
        grid=(N,),
        in_specs=[pl.BlockSpec(in_block(L_flat), in_index),
                  pl.BlockSpec((Cin_p, 25), lambda n: (0, 0)),
                  pl.BlockSpec((Cout_p, Cin_p + 1), lambda n: (0, 0))],
        out_specs=pl.BlockSpec((1, Cout_p, L_pad), lambda n: (n, 0, 0)),
        compiler_params=pltpu.CompilerParams(
            dimension_semantics=("parallel",),
            vmem_limit_bytes=32 * 1024 * 1024),
        cost_estimate=cost,
    )(h_flat, wdw, wpw)

    if return_wide:
        # Inter-layer fast path: skip the un-flatten / slice HBM round trip.
        # TODO(synk): padded columns j in [Wo, W_row) and rows past Ho*W_row
        # hold garbage; mask them in-kernel before consuming the wide layout.
        return out_wide, (Cout, Ho, Wo, W_row)

    # wide flat layout -> NCHW (drop padded channels / padded columns)
    out = out_wide[:, :Cout, :Ho * W_row]
    out = out.reshape(N, Cout, Ho, W_row)[:, :, :, :Wo]
    return out


res_module_forward_jit = jax.jit(res_module_forward, static_argnums=(2,),
                                 static_argnames=("mxu_bf16", "return_wide"))


# --------------------------------------------------------------------------
# Pure-JAX reference (mirrors the PyTorch forward) for verification
# --------------------------------------------------------------------------
def ref_forward(x, w_dw_t, b_dw, w_pw_t, b_pw, stride):
    N, Cin, H, W = x.shape
    Cout = w_pw_t.shape[0]
    if stride == 2:
        h = jnp.pad(x, ((0, 0), (0, 0), (1, 2), (1, 2)))
        xres = lax.reduce_window(x, -jnp.inf, lax.max,
                                 (1, 1, 2, 2), (1, 1, 2, 2), 'VALID')
        pad = [(0, 0), (0, 0)]
    else:
        h = x
        xres = x
        pad = [(2, 2), (2, 2)]
    y = lax.conv_general_dilated(h, w_dw_t, (stride, stride), pad,
                                 feature_group_count=Cin,
                                 dimension_numbers=('NCHW', 'OIHW', 'NCHW'),
                                 precision=lax.Precision.HIGHEST)
    y = y + b_dw[None, :, None, None]
    y = lax.conv_general_dilated(y, w_pw_t, (1, 1), [(0, 0), (0, 0)],
                                 dimension_numbers=('NCHW', 'OIHW', 'NCHW'),
                                 precision=lax.Precision.HIGHEST)
    y = y + b_pw[None, :, None, None]
    if Cout > Cin:
        xres = jnp.pad(xres, ((0, 0), (0, Cout - Cin), (0, 0), (0, 0)))
    return jnp.maximum(y + xres, 0.0)


def _make_params(key, Cin, Cout):
    k2, k3, k4, k5 = jax.random.split(key, 4)
    w_dw_t = jax.random.normal(k2, (Cin, 1, 5, 5), jnp.float32) * 0.2
    b_dw = jax.random.normal(k3, (Cin,), jnp.float32) * 0.1
    w_pw_t = jax.random.normal(k4, (Cout, Cin, 1, 1), jnp.float32) * 0.2
    b_pw = jax.random.normal(k5, (Cout,), jnp.float32) * 0.1
    return (w_dw_t, b_dw, w_pw_t, b_pw)


# --------------------------------------------------------------------------
if __name__ == "__main__":
    key = jax.random.PRNGKey(0)

    # config 1: the requested small shape; config 2 exercises Cout_p > Cin_p
    configs = [
        (2, 4, 8, 16, 16, True),    # N, Cin, Cout, H, W, also_test_bf16_mxu
        (2, 8, 16, 8, 8, False),
    ]

    for (N, Cin, Cout, H, W, test_bf16) in configs:
        kx, kp, key = jax.random.split(key, 3)
        x = jax.random.normal(kx, (N, Cin, H, W), jnp.float32)
        params = _make_params(kp, Cin, Cout)

        for stride in (1, 2):
            ref = ref_forward(x, *params, stride)

            out = jax.block_until_ready(
                res_module_forward_jit(x, params, stride))
            np.testing.assert_allclose(np.asarray(out), np.asarray(ref),
                                       rtol=1e-3, atol=1e-3)

            if test_bf16:
                # bf16 MXU operands (v6e/v7x fast path), f32 accumulation.
                out_bf = jax.block_until_ready(
                    res_module_forward_jit(x, params, stride, mxu_bf16=True))
                np.testing.assert_allclose(np.asarray(out_bf), np.asarray(ref),
                                           rtol=5e-2, atol=5e-2)

    print("KERNEL_OK")
</pallas_src>

<mosaic_0001>
module attributes {stable_mosaic.version = 11 : i64} {
  func.func @kernel(%arg0: i32, %arg1: memref<1x8x512xf32, #tpu.memory_space<vmem>>, %arg2: memref<8x25xf32, #tpu.memory_space<vmem>>, %arg3: memref<8x9xf32, #tpu.memory_space<vmem>>, %arg4: memref<1x8x384xf32, #tpu.memory_space<vmem>>) attributes {dimension_semantics = [#tpu.dimension_semantics<parallel>], iteration_bounds = array<i64: 2>, scalar_prefetch = 0 : i64, scratch_operands = 0 : i64, tpu.core_type = #tpu.core_type<tc>, window_params = [{transform_indices = @transform_0, window_bounds = array<i64: 1, 8, 512>}, {pipeline_mode = #tpu.pipeline_mode<synchronous>, transform_indices = @transform_1, window_bounds = array<i64: 8, 25>}, {pipeline_mode = #tpu.pipeline_mode<synchronous>, transform_indices = @transform_2, window_bounds = array<i64: 8, 9>}, {transform_indices = @transform_3, window_bounds = array<i64: 1, 8, 384>}]} {
    %c0 = arith.constant 0 : index
    %c0_0 = arith.constant 0 : index
    %0 = vector.load %arg2[%c0, %c0_0] : memref<8x25xf32, #tpu.memory_space<vmem>>, vector<8x25xf32>
    %c0_1 = arith.constant 0 : index
    %c0_2 = arith.constant 0 : index
    %1 = vector.load %arg3[%c0_1, %c0_2] : memref<8x9xf32, #tpu.memory_space<vmem>>, vector<8x8xf32>
    %c0_3 = arith.constant 0 : index
    %c8 = arith.constant 8 : index
    %2 = vector.load %arg3[%c0_3, %c8] : memref<8x9xf32, #tpu.memory_space<vmem>>, vector<8x1xf32>
    %c0_4 = arith.constant 0 : index
    %c0_5 = arith.constant 0 : index
    %c0_6 = arith.constant 0 : index
    %3 = vector.load %arg1[%c0_4, %c0_5, %c0_6] : memref<1x8x512xf32, #tpu.memory_space<vmem>>, vector<1x8x468xf32>
    %4 = vector.shape_cast %3 : vector<1x8x468xf32> to vector<8x468xf32>
    %5 = vector.extract_strided_slice %4 {offsets = [0, 42], sizes = [8, 384], strides = [1, 1]} : vector<8x468xf32> to vector<8x384xf32>
    %6 = vector.extract_strided_slice %4 {offsets = [0, 0], sizes = [8, 384], strides = [1, 1]} : vector<8x468xf32> to vector<8x384xf32>
    %7 = vector.extract_strided_slice %0 {offsets = [0, 0], sizes = [8, 1], strides = [1, 1]} : vector<8x25xf32> to vector<8x1xf32>
    %8 = vector.broadcast %7 : vector<8x1xf32> to vector<8x384xf32>
    %9 = arith.mulf %6, %8 : vector<8x384xf32>
    %10 = vector.extract_strided_slice %4 {offsets = [0, 1], sizes = [8, 384], strides = [1, 1]} : vector<8x468xf32> to vector<8x384xf32>
    %11 = vector.extract_strided_slice %0 {offsets = [0, 1], sizes = [8, 1], strides = [1, 1]} : vector<8x25xf32> to vector<8x1xf32>
    %12 = vector.broadcast %11 : vector<8x1xf32> to vector<8x384xf32>
    %13 = arith.mulf %10, %12 : vector<8x384xf32>
    %14 = arith.addf %9, %13 : vector<8x384xf32>
    %15 = vector.extract_strided_slice %4 {offsets = [0, 2], sizes = [8, 384], strides = [1, 1]} : vector<8x468xf32> to vector<8x384xf32>
    %16 = vector.extract_strided_slice %0 {offsets = [0, 2], sizes = [8, 1], strides = [1, 1]} : vector<8x25xf32> to vector<8x1xf32>
    %17 = vector.broadcast %16 : vector<8x1xf32> to vector<8x384xf32>
    %18 = arith.mulf %15, %17 : vector<8x384xf32>
    %19 = arith.addf %14, %18 : vector<8x384xf32>
    %20 = vector.extract_strided_slice %4 {offsets = [0, 3], sizes = [8, 384], strides = [1, 1]} : vector<8x468xf32> to vector<8x384xf32>
    %21 = vector.extract_strided_slice %0 {offsets = [0, 3], sizes = [8, 1], strides = [1, 1]} : vector<8x25xf32> to vector<8x1xf32>
    %22 = vector.broadcast %21 : vector<8x1xf32> to vector<8x384xf32>
    %23 = arith.mulf %20, %22 : vector<8x384xf32>
    %24 = arith.addf %19, %23 : vector<8x384xf32>
    %25 = vector.extract_strided_slice %4 {offsets = [0, 4], sizes = [8, 384], strides = [1, 1]} : vector<8x468xf32> to vector<8x384xf32>
    %26 = vector.extract_strided_slice %0 {offsets = [0, 4], sizes = [8, 1], strides = [1, 1]} : vector<8x25xf32> to vector<8x1xf32>
    %27 = vector.broadcast %26 : vector<8x1xf32> to vector<8x384xf32>
    %28 = arith.mulf %25, %27 : vector<8x384xf32>
    %29 = arith.addf %24, %28 : vector<8x384xf32>
    %30 = vector.extract_strided_slice %4 {offsets = [0, 20], sizes = [8, 384], strides = [1, 1]} : vector<8x468xf32> to vector<8x384xf32>
    %31 = vector.extract_strided_slice %0 {offsets = [0, 5], sizes = [8, 1], strides = [1, 1]} : vector<8x25xf32> to vector<8x1xf32>
    %32 = vector.broadcast %31 : vector<8x1xf32> to vector<8x384xf32>
    %33 = arith.mulf %30, %32 : vector<8x384xf32>
    %34 = arith.addf %29, %33 : vector<8x384xf32>
    %35 = vector.extract_strided_slice %4 {offsets = [0, 21], sizes = [8, 384], strides = [1, 1]} : vector<8x468xf32> to vector<8x384xf32>
    %36 = vector.extract_strided_slice %0 {offsets = [0, 6], sizes = [8, 1], strides = [1, 1]} : vector<8x25xf32> to vector<8x1xf32>
    %37 = vector.broadcast %36 : vector<8x1xf32> to vector<8x384xf32>
    %38 = arith.mulf %35, %37 : vector<8x384xf32>
    %39 = arith.addf %34, %38 : vector<8x384xf32>
    %40 = vector.extract_strided_slice %4 {offsets = [0, 22], sizes = [8, 384], strides = [1, 1]} : vector<8x468xf32> to vector<8x384xf32>
    %41 = vector.extract_strided_slice %0 {offsets = [0, 7], sizes = [8, 1], strides = [1, 1]} : vector<8x25xf32> to vector<8x1xf32>
    %42 = vector.broadcast %41 : vector<8x1xf32> to vector<8x384xf32>
    %43 = arith.mulf %40, %42 : vector<8x384xf32>
    %44 = arith.addf %39, %43 : vector<8x384xf32>
    %45 = vector.extract_strided_slice %4 {offsets = [0, 23], sizes = [8, 384], strides = [1, 1]} : vector<8x468xf32> to vector<8x384xf32>
    %46 = vector.extract_strided_slice %0 {offsets = [0, 8], sizes = [8, 1], strides = [1, 1]} : vector<8x25xf32> to vector<8x1xf32>
    %47 = vector.broadcast %46 : vector<8x1xf32> to vector<8x384xf32>
    %48 = arith.mulf %45, %47 : vector<8x384xf32>
    %49 = arith.addf %44, %48 : vector<8x384xf32>
    %50 = vector.extract_strided_slice %4 {offsets = [0, 24], sizes = [8, 384], strides = [1, 1]} : vector<8x468xf32> to vector<8x384xf32>
    %51 = vector.extract_strided_slice %0 {offsets = [0, 9], sizes = [8, 1], strides = [1, 1]} : vector<8x25xf32> to vector<8x1xf32>
    %52 = vector.broadcast %51 : vector<8x1xf32> to vector<8x384xf32>
    %53 = arith.mulf %50, %52 : vector<8x384xf32>
    %54 = arith.addf %49, %53 : vector<8x384xf32>
    %55 = vector.extract_strided_slice %4 {offsets = [0, 40], sizes = [8, 384], strides = [1, 1]} : vector<8x468xf32> to vector<8x384xf32>
    %56 = vector.extract_strided_slice %0 {offsets = [0, 10], sizes = [8, 1], strides = [1, 1]} : vector<8x25xf32> to vector<8x1xf32>
    %57 = vector.broadcast %56 : vector<8x1xf32> to vector<8x384xf32>
    %58 = arith.mulf %55, %57 : vector<8x384xf32>
    %59 = arith.addf %54, %58 : vector<8x384xf32>
    %60 = vector.extract_strided_slice %4 {offsets = [0, 41], sizes = [8, 384], strides = [1, 1]} : vector<8x468xf32> to vector<8x384xf32>
    %61 = vector.extract_strided_slice %0 {offsets = [0, 11], sizes = [8, 1], strides = [1, 1]} : vector<8x25xf32> to vector<8x1xf32>
    %62 = vector.broadcast %61 : vector<8x1xf32> to vector<8x384xf32>
    %63 = arith.mulf %60, %62 : vector<8x384xf32>
    %64 = arith.addf %59, %63 : vector<8x384xf32>
    %65 = vector.extract_strided_slice %4 {offsets = [0, 42], sizes = [8, 384], strides = [1, 1]} : vector<8x468xf32> to vector<8x384xf32>
    %66 = vector.extract_strided_slice %0 {offsets = [0, 12], sizes = [8, 1], strides = [1, 1]} : vector<8x25xf32> to vector<8x1xf32>
    %67 = vector.broadcast %66 : vector<8x1xf32> to vector<8x384xf32>
    %68 = arith.mulf %65, %67 : vector<8x384xf32>
    %69 = arith.addf %64, %68 : vector<8x384xf32>
    %70 = vector.extract_strided_slice %4 {offsets = [0, 43], sizes = [8, 384], strides = [1, 1]} : vector<8x468xf32> to vector<8x384xf32>
    %71 = vector.extract_strided_slice %0 {offsets = [0, 13], sizes = [8, 1], strides = [1, 1]} : vector<8x25xf32> to vector<8x1xf32>
    %72 = vector.broadcast %71 : vector<8x1xf32> to vector<8x384xf32>
    %73 = arith.mulf %70, %72 : vector<8x384xf32>
    %74 = arith.addf %69, %73 : vector<8x384xf32>
    %75 = vector.extract_strided_slice %4 {offsets = [0, 44], sizes = [8, 384], strides = [1, 1]} : vector<8x468xf32> to vector<8x384xf32>
    %76 = vector.extract_strided_slice %0 {offsets = [0, 14], sizes = [8, 1], strides = [1, 1]} : vector<8x25xf32> to vector<8x1xf32>
    %77 = vector.broadcast %76 : vector<8x1xf32> to vector<8x384xf32>
    %78 = arith.mulf %75, %77 : vector<8x384xf32>
    %79 = arith.addf %74, %78 : vector<8x384xf32>
    %80 = vector.extract_strided_slice %4 {offsets = [0, 60], sizes = [8, 384], strides = [1, 1]} : vector<8x468xf32> to vector<8x384xf32>
    %81 = vector.extract_strided_slice %0 {offsets = [0, 15], sizes = [8, 1], strides = [1, 1]} : vector<8x25xf32> to vector<8x1xf32>
    %82 = vector.broadcast %81 : vector<8x1xf32> to vector<8x384xf32>
    %83 = arith.mulf %80, %82 : vector<8x384xf32>
    %84 = arith.addf %79, %83 : vector<8x384xf32>
    %85 = vector.extract_strided_slice %4 {offsets = [0, 61], sizes = [8, 384], strides = [1, 1]} : vector<8x468xf32> to vector<8x384xf32>
    %86 = vector.extract_strided_slice %0 {offsets = [0, 16], sizes = [8, 1], strides = [1, 1]} : vector<8x25xf32> to vector<8x1xf32>
    %87 = vector.broadcast %86 : vector<8x1xf32> to vector<8x384xf32>
    %88 = arith.mulf %85, %87 : vector<8x384xf32>
    %89 = arith.addf %84, %88 : vector<8x384xf32>
    %90 = vector.extract_strided_slice %4 {offsets = [0, 62], sizes = [8, 384], strides = [1, 1]} : vector<8x468xf32> to vector<8x384xf32>
    %91 = vector.extract_strided_slice %0 {offsets = [0, 17], sizes = [8, 1], strides = [1, 1]} : vector<8x25xf32> to vector<8x1xf32>
    %92 = vector.broadcast %91 : vector<8x1xf32> to vector<8x384xf32>
    %93 = arith.mulf %90, %92 : vector<8x384xf32>
    %94 = arith.addf %89, %93 : vector<8x384xf32>
    %95 = vector.extract_strided_slice %4 {offsets = [0, 63], sizes = [8, 384], strides = [1, 1]} : vector<8x468xf32> to vector<8x384xf32>
    %96 = vector.extract_strided_slice %0 {offsets = [0, 18], sizes = [8, 1], strides = [1, 1]} : vector<8x25xf32> to vector<8x1xf32>
    %97 = vector.broadcast %96 : vector<8x1xf32> to vector<8x384xf32>
    %98 = arith.mulf %95, %97 : vector<8x384xf32>
    %99 = arith.addf %94, %98 : vector<8x384xf32>
    %100 = vector.extract_strided_slice %4 {offsets = [0, 64], sizes = [8, 384], strides = [1, 1]} : vector<8x468xf32> to vector<8x384xf32>
    %101 = vector.extract_strided_slice %0 {offsets = [0, 19], sizes = [8, 1], strides = [1, 1]} : vector<8x25xf32> to vector<8x1xf32>
    %102 = vector.broadcast %101 : vector<8x1xf32> to vector<8x384xf32>
    %103 = arith.mulf %100, %102 : vector<8x384xf32>
    %104 = arith.addf %99, %103 : vector<8x384xf32>
    %105 = vector.extract_strided_slice %4 {offsets = [0, 80], sizes = [8, 384], strides = [1, 1]} : vector<8x468xf32> to vector<8x384xf32>
    %106 = vector.extract_strided_slice %0 {offsets = [0, 20], sizes = [8, 1], strides = [1, 1]} : vector<8x25xf32> to vector<8x1xf32>
    %107 = vector.broadcast %106 : vector<8x1xf32> to vector<8x384xf32>
    %108 = arith.mulf %105, %107 : vector<8x384xf32>
    %109 = arith.addf %104, %108 : vector<8x384xf32>
    %110 = vector.extract_strided_slice %4 {offsets = [0, 81], sizes = [8, 384], strides = [1, 1]} : vector<8x468xf32> to vector<8x384xf32>
    %111 = vector.extract_strided_slice %0 {offsets = [0, 21], sizes = [8, 1], strides = [1, 1]} : vector<8x25xf32> to vector<8x1xf32>
    %112 = vector.broadcast %111 : vector<8x1xf32> to vector<8x384xf32>
    %113 = arith.mulf %110, %112 : vector<8x384xf32>
    %114 = arith.addf %109, %113 : vector<8x384xf32>
    %115 = vector.extract_strided_slice %4 {offsets = [0, 82], sizes = [8, 384], strides = [1, 1]} : vector<8x468xf32> to vector<8x384xf32>
    %116 = vector.extract_strided_slice %0 {offsets = [0, 22], sizes = [8, 1], strides = [1, 1]} : vector<8x25xf32> to vector<8x1xf32>
    %117 = vector.broadcast %116 : vector<8x1xf32> to vector<8x384xf32>
    %118 = arith.mulf %115, %117 : vector<8x384xf32>
    %119 = arith.addf %114, %118 : vector<8x384xf32>
    %120 = vector.extract_strided_slice %4 {offsets = [0, 83], sizes = [8, 384], strides = [1, 1]} : vector<8x468xf32> to vector<8x384xf32>
    %121 = vector.extract_strided_slice %0 {offsets = [0, 23], sizes = [8, 1], strides = [1, 1]} : vector<8x25xf32> to vector<8x1xf32>
    %122 = vector.broadcast %121 : vector<8x1xf32> to vector<8x384xf32>
    %123 = arith.mulf %120, %122 : vector<8x384xf32>
    %124 = arith.addf %119, %123 : vector<8x384xf32>
    %125 = vector.extract_strided_slice %4 {offsets = [0, 84], sizes = [8, 384], strides = [1, 1]} : vector<8x468xf32> to vector<8x384xf32>
    %126 = vector.extract_strided_slice %0 {offsets = [0, 24], sizes = [8, 1], strides = [1, 1]} : vector<8x25xf32> to vector<8x1xf32>
    %127 = vector.broadcast %126 : vector<8x1xf32> to vector<8x384xf32>
    %128 = arith.mulf %125, %127 : vector<8x384xf32>
    %129 = arith.addf %124, %128 : vector<8x384xf32>
    %cst = arith.constant dense<0.000000e+00> : vector<8x384xf32>
    %130 = tpu.matmul %1, %129, %cst {dimension_numbers = #tpu.dot_dimension_numbers<[1], [0], [0], [1], [0, 0, 1, 1], [], []>} : vector<8x8xf32>, vector<8x384xf32>, vector<8x384xf32> -> vector<8x384xf32>
    %131 = vector.broadcast %2 : vector<8x1xf32> to vector<8x384xf32>
    %132 = arith.addf %130, %131 : vector<8x384xf32>
    %133 = arith.addf %132, %5 : vector<8x384xf32>
    %cst_7 = arith.constant 0.000000e+00 : f32
    %134 = vector.broadcast %cst_7 : f32 to vector<8x384xf32>
    %135 = arith.maximumf %133, %134 : vector<8x384xf32>
    %c0_8 = arith.constant 0 : index
    %c0_9 = arith.constant 0 : index
    %c0_10 = arith.constant 0 : index
    %136 = vector.load %arg4[%c0_8, %c0_9, %c0_10] : memref<1x8x384xf32, #tpu.memory_space<vmem>>, vector<1x8x384xf32>
    %137 = vector.shape_cast %136 : vector<1x8x384xf32> to vector<8x384xf32>
    %138 = vector.shape_cast %135 : vector<8x384xf32> to vector<1x8x384xf32>
    tpu.vector_store %arg4[%c0_8, %c0_9, %c0_10], %138 {strides = array<i32>} : memref<1x8x384xf32, #tpu.memory_space<vmem>>, vector<1x8x384xf32>,
    return
  }
  func.func @transform_0(%arg0: i32) -> (i32, i32, i32) {
    %c0_i32 = arith.constant 0 : i32
    %c0_i32_0 = arith.constant 0 : i32
    %c0_i32_1 = arith.constant 0 : i32
    return %arg0, %c0_i32, %c0_i32_0 : i32, i32, i32
  }
  func.func @transform_1(%arg0: i32) -> (i32, i32) {
    %c0_i32 = arith.constant 0 : i32
    %c0_i32_0 = arith.constant 0 : i32
    %c0_i32_1 = arith.constant 0 : i32
    return %c0_i32, %c0_i32_0 : i32, i32
  }
  func.func @transform_2(%arg0: i32) -> (i32, i32) {
    %c0_i32 = arith.constant 0 : i32
    %c0_i32_0 = arith.constant 0 : i32
    %c0_i32_1 = arith.constant 0 : i32
    return %c0_i32, %c0_i32_0 : i32, i32
  }
  func.func @transform_3(%arg0: i32) -> (i32, i32, i32) {
    %c0_i32 = arith.constant 0 : i32
    %c0_i32_0 = arith.constant 0 : i32
    %c0_i32_1 = arith.constant 0 : i32
    return %arg0, %c0_i32, %c0_i32_0 : i32, i32, i32
  }
}

</mosaic_0001>

<llo_original>
// kernel: res_module_forward.1
$region0: #{res_module_forward.1}
  #allocation0 [shape = 'u32[]', space=smem, size = 0x4, offset = 0x4, fixed_abs, tag = 'smem constant byte address 0x4 - core index']
  #allocation1 [shape = 'u32[144,128]{1,0:T(1,128)}', space=vmem, size = 0x12000, scoped, tag = 'internal scratch']
  %s0 = inlined_call_operand.vmem [shape: f32[2,8,512], index: 0, kind: input, shape index: {}]
  %s1 = inlined_call_operand.vmem [shape: f32[8,25], index: 1, kind: input, shape index: {}]
  %s2 = inlined_call_operand.vmem [shape: f32[8,9], index: 2, kind: input, shape index: {}]
  %s3 = inlined_call_operand.vmem [shape: f32[2,8,384], index: 3, kind: output, shape index: {}]
  %s4 = sld [smem:[#allocation0]]
  $region45: #{res_module_forward.1} parent=0
    _
  %s6 = ssub.s32 1, %s4
  %s7 = scalar_select 0, %s6, %s4
  loop: start=0, step=1, limit=4
  $region2: #{res_module_forward.1} parent=0 // loop_pre_header
    _
  $region3: #{res_module_forward.1} parent=0 // loop_header
    %s9 = sphi 0, %s13
    %p10 = scmp.ge.s32.totalorder %s9, 4
    %s19 = sphi 0, %s21
    %s22 = sphi 0, %s19
    %s23 = sphi 0, %s22
    %s39 = sphi 0, %s23
    %s43 = sphi 0, %s43
    %s45 = sphi 0, %s43
    %s46 = sphi 0, %s45
    %s60 = sphi 0, %s46
    %s64 = sphi 0, %s64
    %s66 = sphi 0, %s64
    %s67 = sphi 0, %s66
    %s81 = sphi 0, %s67
    %s87 = sphi 0, %s89
    %s90 = sphi 0, %s87
    %s91 = sphi 0, %s90
    %s107 = sphi 0, %s91
  $region4: #{res_module_forward.1} parent=0 // loop_header_branch
    %12 = sbr.rel (%p10) target = $region8
  $region5: #{res_module_forward.1} parent=0 // loop_body
    %s14 = ssub.s32 %s9, 1
    %s15 = ssub.s32 %s9, 2
    %s16 = sadd.s32 %s9, 1
    %s17 = ssub.s32 %s9, %s16
    %p18 = scmp.eq.s32.totalorder %s17, 0
    %s20 = sadd.s32 %s19, 1
    %s21 = scalar_select %p18, %s19, %s20
    %p24 = pneg %p18
    %p25 = scmp.eq.s32.totalorder %s9, 1
    %p26 = por %p24, %p25
    %p27 = scmp.ne.s32.totalorder %s19, %s22
    %p28 = scmp.eq.s32.totalorder %s9, 0
    %p29 = por %p27, %p28
    %p30 = scmp.ne.s32.totalorder %s19, %s22
    %p31 = scmp.eq.s32.totalorder %s14, 1
    %p32 = por %p30, %p31
    %p33 = scmp.ne.s32.totalorder %s22, %s23
    %p34 = scmp.eq.s32.totalorder %s14, 0
    %p35 = por %p33, %p34
    %p36 = scmp.ne.s32.totalorder %s22, %s23
    %p37 = scmp.eq.s32.totalorder %s15, 1
    %p38 = por %p36, %p37
    %p40 = scmp.ne.s32.totalorder %s23, %s39
    %p41 = scmp.eq.s32.totalorder %s15, 0
    %p42 = por %p40, %p41
    %s44 = sadd.s32 %s43, 1
    %p47 = scmp.eq.s32.totalorder %s9, 1
    %p48 = scmp.ne.s32.totalorder %s43, %s45
    %p49 = scmp.eq.s32.totalorder %s9, 0
    %p50 = por %p48, %p49
    %p51 = scmp.ne.s32.totalorder %s43, %s45
    %p52 = scmp.eq.s32.totalorder %s14, 1
    %p53 = por %p51, %p52
    %p54 = scmp.ne.s32.totalorder %s45, %s46
    %p55 = scmp.eq.s32.totalorder %s14, 0
    %p56 = por %p54, %p55
    %p57 = scmp.ne.s32.totalorder %s45, %s46
    %p58 = scmp.eq.s32.totalorder %s15, 1
    %p59 = por %p57, %p58
    %p61 = scmp.ne.s32.totalorder %s46, %s60
    %p62 = scmp.eq.s32.totalorder %s15, 0
    %p63 = por %p61, %p62
    %s65 = sadd.s32 %s64, 1
    %p68 = scmp.eq.s32.totalorder %s9, 1
    %p69 = scmp.ne.s32.totalorder %s64, %s66
    %p70 = scmp.eq.s32.totalorder %s9, 0
    %p71 = por %p69, %p70
    %p72 = scmp.ne.s32.totalorder %s64, %s66
    %p73 = scmp.eq.s32.totalorder %s14, 1
    %p74 = por %p72, %p73
    %p75 = scmp.ne.s32.totalorder %s66, %s67
    %p76 = scmp.eq.s32.totalorder %s14, 0
    %p77 = por %p75, %p76
    %p78 = scmp.ne.s32.totalorder %s66, %s67
    %p79 = scmp.eq.s32.totalorder %s15, 1
    %p80 = por %p78, %p79
    %p82 = scmp.ne.s32.totalorder %s67, %s81
    %p83 = scmp.eq.s32.totalorder %s15, 0
    %p84 = por %p82, %p83
    %s85 = ssub.s32 %s9, %s16
    %p86 = scmp.eq.s32.totalorder %s85, 0
    %s88 = sadd.s32 %s87, 1
    %s89 = scalar_select %p86, %s87, %s88
    %p92 = pneg %p86
    %p93 = scmp.eq.s32.totalorder %s9, 1
    %p94 = por %p92, %p93
    %p95 = scmp.ne.s32.totalorder %s87, %s90
    %p96 = scmp.eq.s32.totalorder %s9, 0
    %p97 = por %p95, %p96
    %p98 = scmp.ne.s32.totalorder %s87, %s90
    %p99 = scmp.eq.s32.totalorder %s14, 1
    %p100 = por %p98, %p99
    %p101 = scmp.ne.s32.totalorder %s90, %s91
    %p102 = scmp.eq.s32.totalorder %s14, 0
    %p103 = por %p101, %p102
    %p104 = scmp.ne.s32.totalorder %s90, %s91
    %p105 = scmp.eq.s32.totalorder %s15, 1
    %p106 = por %p104, %p105
    %p108 = scmp.ne.s32.totalorder %s91, %s107
    %p109 = scmp.eq.s32.totalorder %s15, 0
    %p110 = por %p108, %p109
    %p111 = scmp.le.s32.totalorder 1, %s9
    %p112 = scmp.lt.s32.totalorder %s9, 3
    %p113 = pnand %p111, %p112
    %p114 = pneg %p113
    // Predicated region
    $region9: #{res_module_forward.1} parent=5 // pred_check
      _
    $region10: #{res_module_forward.1} parent=5 // pred_check_branch
      %116 = sbr.rel (%p113) target = $region12
    $region11: #{res_module_forward.1} parent=5 // pred_region
      %s117 = ssub.s32 %s9, 1
      // Predicated region
      $region13: #{res_module_forward.1} parent=11 // pred_check
        %p118 = pneg %p56
      $region14: #{res_module_forward.1} parent=11 // pred_check_branch
        %120 = sbr.rel (%p118) target = $region16
      $region15: #{res_module_forward.1} parent=11 // pred_region
        _
      $region16: #{res_module_forward.1} parent=11 // pred_fallthru
        _
      // Predicated region
      $region17: #{res_module_forward.1} parent=11 // pred_check
        %p121 = pneg %p77
      $region18: #{res_module_forward.1} parent=11 // pred_check_branch
        %123 = sbr.rel (%p121) target = $region20
      $region19: #{res_module_forward.1} parent=11 // pred_region
        _
      $region20: #{res_module_forward.1} parent=11 // pred_fallthru
        _
    $region12: #{res_module_forward.1} parent=5 // pred_fallthru
      _
    %p124 = scmp.lt.s32.totalorder %s9, 2
    // Predicated region
    $region21: #{res_module_forward.1} parent=5 // pred_check
      %p125 = pneg %p124
    $region22: #{res_module_forward.1} parent=5 // pred_check_branch
      %127 = sbr.rel (%p125) target = $region24
    $region23: #{res_module_forward.1} parent=5 // pred_region
      // Predicated region
      $region25: #{res_module_forward.1} parent=23 // pred_check
        %p128 = pneg %p29
      $region26: #{res_module_forward.1} parent=23 // pred_check_branch
        %130 = sbr.rel (%p128) target = $region28
      $region27: #{res_module_forward.1} parent=23 // pred_region
        %p131 = scmp.lt.s32.totalorder %s9, 1
        %s132 = scalar_select %p131, %s9, 1
        %s133 = smul.addr %s132, 4
        %s134 = smul.addr %s133, 8
        %s135 = scalar_lea.vmem %s0, %s134
      $region28: #{res_module_forward.1} parent=23 // pred_fallthru
        _
    $region24: #{res_module_forward.1} parent=5 // pred_fallthru
      _
    %p136 = scmp.le.s32.totalorder 1, %s9
    %p137 = scmp.lt.s32.totalorder %s9, 3
    %p138 = pnand %p136, %p137
    %p139 = pneg %p138
    // Predicated region
    $region29: #{res_module_forward.1} parent=5 // pred_check
      _
    $region30: #{res_module_forward.1} parent=5 // pred_check_branch
      %141 = sbr.rel (%p138) target = $region32
    $region31: #{res_module_forward.1} parent=5 // pred_region
      %s142 = ssub.s32 %s9, 1
      %p143 = scmp.lt.s32.totalorder %s14, 1
      %s144 = scalar_select %p143, %s14, 1
      %s145 = smul.addr %s144, 4
      %s146 = smul.addr %s145, 8
      %s147 = scalar_lea.vmem %s0, %s146
      %p148 = pneg %p35
      %p149 = pneg %p32
      %p150 = pneg %p56
      %p151 = pneg %p53
      %p152 = pneg %p77
      %p153 = pneg %p74
      %p154 = pneg %p103
      %p155 = pneg %p100
      %p156 = scmp.lt.s32.totalorder %s14, 1
      %s157 = scalar_select %p156, %s14, 1
      %s158 = smul.addr %s157, 3
      %s159 = smul.addr %s158, 8
      %s160 = scalar_lea.vmem %s3, %s159
      %p161 = scmp.lt.s32.totalorder %s14, 1
      %s162 = scalar_select %p161, %s14, 1
      %s163 = smul.addr %s162, 4
      %s164 = smul.addr %s163, 8
      %s165 = scalar_lea.vmem %s0, %s164
      %p166 = scmp.lt.s32.totalorder %s14, 1
      %s167 = scalar_select %p166, %s14, 1
      %s168 = smul.addr %s167, 3
      %s169 = smul.addr %s168, 8
      %s170 = scalar_lea.vmem %s3, %s169
      %v171 = vld [vmem:[%s1] sm:$0xff]
      %v172 = vld [vmem:[%s2] sm:$0xff]
      %v173 = vld [vmem:[%s165] sm:$0xff]
      %v174 = vld [vmem:[%s165 + $0x8] sm:$0xff]
      %v175 = vld [vmem:[%s165 + $0x10] sm:$0xff]
      %v176 = vld [vmem:[%s165 + $0x18] sm:$0xff]
      %178 = vset.pattern.permute.xlu0 0
      %179 = vperm.xlu0 %178, %v171
      %v180 = vpop.permute.xlu0 %179
      %v182 = vmul.f32 %v173, %v180
      %v183 = vmul.f32 %v174, %v180
      %v184 = vmul.f32 %v175, %v180
      %185 = vset.pattern.permute.xlu0 1
      %186 = vperm.xlu0 %185, %v171
      %v187 = vpop.permute.xlu0 %186
      %v189 = vmul.f32 %v173, %v187
      %v190 = vmul.f32 %v174, %v187
      %v191 = vmul.f32 %v175, %v187
      %v192 = vmul.f32 %v176, %v187
      %197 = vrot.lane.b32.xlu0 %v189, 127
      %v198 = vpop.permute.xlu0 %197
      %199 = vrot.lane.b32.xlu0 %v190, 127
      %v200 = vpop.permute.xlu0 %199
      %201 = vrot.lane.b32.xlu0 %v191, 127
      %v202 = vpop.permute.xlu0 %201
      %203 = vrot.lane.b32.xlu0 %v192, 127
      %v204 = vpop.permute.xlu0 %203
      %vm205 = vcmask 1039360
      %v206 = vsel %vm205, %v198, %v200
      %v207 = vsel %vm205, %v200, %v202
      %v208 = vsel %vm205, %v202, %v204
      %v212 = vadd.f32 %v182, %v206
      %v213 = vadd.f32 %v183, %v207
      %v214 = vadd.f32 %v184, %v208
      %215 = vset.pattern.permute.xlu0 2
      %216 = vperm.xlu0 %215, %v171
      %v217 = vpop.permute.xlu0 %216
      %v219 = vmul.f32 %v173, %v217
      %v220 = vmul.f32 %v174, %v217
      %v221 = vmul.f32 %v175, %v217
      %v222 = vmul.f32 %v176, %v217
      %227 = vrot.lane.b32.xlu0 %v219, 126
      %v228 = vpop.permute.xlu0 %227
      %229 = vrot.lane.b32.xlu0 %v220, 126
      %v230 = vpop.permute.xlu0 %229
      %231 = vrot.lane.b32.xlu0 %v221, 126
      %v232 = vpop.permute.xlu0 %231
      %233 = vrot.lane.b32.xlu0 %v222, 126
      %v234 = vpop.permute.xlu0 %233
      %vm235 = vcmask 1031168
      %v236 = vsel %vm235, %v228, %v230
      %v237 = vsel %vm235, %v230, %v232
      %v238 = vsel %vm235, %v232, %v234
      %v242 = vadd.f32 %v212, %v236
      %v243 = vadd.f32 %v213, %v237
      %v244 = vadd.f32 %v214, %v238
      %245 = vset.pattern.permute.xlu0 3
      %246 = vperm.xlu0 %245, %v171
      %v247 = vpop.permute.xlu0 %246
      %v249 = vmul.f32 %v173, %v247
      %v250 = vmul.f32 %v174, %v247
      %v251 = vmul.f32 %v175, %v247
      %v252 = vmul.f32 %v176, %v247
      %257 = vrot.lane.b32.xlu0 %v249, 125
      %v258 = vpop.permute.xlu0 %257
      %259 = vrot.lane.b32.xlu0 %v250, 125
      %v260 = vpop.permute.xlu0 %259
      %261 = vrot.lane.b32.xlu0 %v251, 125
      %v262 = vpop.permute.xlu0 %261
      %263 = vrot.lane.b32.xlu0 %v252, 125
      %v264 = vpop.permute.xlu0 %263
      %vm265 = vcmask 1022976
      %v266 = vsel %vm265, %v258, %v260
      %v267 = vsel %vm265, %v260, %v262
      %v268 = vsel %vm265, %v262, %v264
      %v272 = vadd.f32 %v242, %v266
      %v273 = vadd.f32 %v243, %v267
      %v274 = vadd.f32 %v244, %v268
      %275 = vset.pattern.permute.xlu0 4
      %276 = vperm.xlu0 %275, %v171
      %v277 = vpop.permute.xlu0 %276
      %v279 = vmul.f32 %v173, %v277
      %v280 = vmul.f32 %v174, %v277
      %v281 = vmul.f32 %v175, %v277
      %v282 = vmul.f32 %v176, %v277
      %287 = vrot.lane.b32.xlu0 %v279, 124
      %v288 = vpop.permute.xlu0 %287
      %289 = vrot.lane.b32.xlu0 %v280, 124
      %v290 = vpop.permute.xlu0 %289
      %291 = vrot.lane.b32.xlu0 %v281, 124
      %v292 = vpop.permute.xlu0 %291
      %293 = vrot.lane.b32.xlu0 %v282, 124
      %v294 = vpop.permute.xlu0 %293
      %vm295 = vcmask 1014784
      %v296 = vsel %vm295, %v288, %v290
      %v297 = vsel %vm295, %v290, %v292
      %v298 = vsel %vm295, %v292, %v294
      %v302 = vadd.f32 %v272, %v296
      %v303 = vadd.f32 %v273, %v297
      %v304 = vadd.f32 %v274, %v298
      %305 = vset.pattern.permute.xlu0 5
      %306 = vperm.xlu0 %305, %v171
      %v307 = vpop.permute.xlu0 %306
      %v309 = vmul.f32 %v173, %v307
      %v310 = vmul.f32 %v174, %v307
      %v311 = vmul.f32 %v175, %v307
      %v312 = vmul.f32 %v176, %v307
      %317 = vrot.lane.b32.xlu0 %v309, 108
      %v318 = vpop.permute.xlu0 %317
      %319 = vrot.lane.b32.xlu0 %v310, 108
      %v320 = vpop.permute.xlu0 %319
      %321 = vrot.lane.b32.xlu0 %v311, 108
      %v322 = vpop.permute.xlu0 %321
      %323 = vrot.lane.b32.xlu0 %v312, 108
      %v324 = vpop.permute.xlu0 %323
      %vm325 = vcmask 883712
      %v326 = vsel %vm325, %v318, %v320
      %v327 = vsel %vm325, %v320, %v322
      %v328 = vsel %vm325, %v322, %v324
      %v332 = vadd.f32 %v302, %v326
      %v333 = vadd.f32 %v303, %v327
      %v334 = vadd.f32 %v304, %v328
      %335 = vset.pattern.permute.xlu0 6
      %336 = vperm.xlu0 %335, %v171
      %v337 = vpop.permute.xlu0 %336
      %v339 = vmul.f32 %v173, %v337
      %v340 = vmul.f32 %v174, %v337
      %v341 = vmul.f32 %v175, %v337
      %v342 = vmul.f32 %v176, %v337
      %347 = vrot.lane.b32.xlu0 %v339, 107
      %v348 = vpop.permute.xlu0 %347
      %349 = vrot.lane.b32.xlu0 %v340, 107
      %v350 = vpop.permute.xlu0 %349
      %351 = vrot.lane.b32.xlu0 %v341, 107
      %v352 = vpop.permute.xlu0 %351
      %353 = vrot.lane.b32.xlu0 %v342, 107
      %v354 = vpop.permute.xlu0 %353
      %vm355 = vcmask 875520
      %v356 = vsel %vm355, %v348, %v350
      %v357 = vsel %vm355, %v350, %v352
      %v358 = vsel %vm355, %v352, %v354
      %v362 = vadd.f32 %v332, %v356
      %v363 = vadd.f32 %v333, %v357
      %v364 = vadd.f32 %v334, %v358
      %365 = vset.pattern.permute.xlu0 7
      %366 = vperm.xlu0 %365, %v171
      %v367 = vpop.permute.xlu0 %366
      %v369 = vmul.f32 %v173, %v367
      %v370 = vmul.f32 %v174, %v367
      %v371 = vmul.f32 %v175, %v367
      %v372 = vmul.f32 %v176, %v367
      %377 = vrot.lane.b32.xlu0 %v369, 106
      %v378 = vpop.permute.xlu0 %377
      %379 = vrot.lane.b32.xlu0 %v370, 106
      %v380 = vpop.permute.xlu0 %379
      %381 = vrot.lane.b32.xlu0 %v371, 106
      %v382 = vpop.permute.xlu0 %381
      %383 = vrot.lane.b32.xlu0 %v372, 106
      %v384 = vpop.permute.xlu0 %383
      %vm385 = vcmask 867328
      %v386 = vsel %vm385, %v378, %v380
      %v387 = vsel %vm385, %v380, %v382
      %v388 = vsel %vm385, %v382, %v384
      %v392 = vadd.f32 %v362, %v386
      %v393 = vadd.f32 %v363, %v387
      %v394 = vadd.f32 %v364, %v388
      %395 = vset.pattern.permute.xlu0 8
      %396 = vperm.xlu0 %395, %v171
      %v397 = vpop.permute.xlu0 %396
      %v399 = vmul.f32 %v173, %v397
      %v400 = vmul.f32 %v174, %v397
      %v401 = vmul.f32 %v175, %v397
      %v402 = vmul.f32 %v176, %v397
      %407 = vrot.lane.b32.xlu0 %v399, 105
      %v408 = vpop.permute.xlu0 %407
      %409 = vrot.lane.b32.xlu0 %v400, 105
      %v410 = vpop.permute.xlu0 %409
      %411 = vrot.lane.b32.xlu0 %v401, 105
      %v412 = vpop.permute.xlu0 %411
      %413 = vrot.lane.b32.xlu0 %v402, 105
      %v414 = vpop.permute.xlu0 %413
      %vm415 = vcmask 859136
      %v416 = vsel %vm415, %v408, %v410
      %v417 = vsel %vm415, %v410, %v412
      %v418 = vsel %vm415, %v412, %v414
      %v422 = vadd.f32 %v392, %v416
      %v423 = vadd.f32 %v393, %v417
      %v424 = vadd.f32 %v394, %v418
      %425 = vset.pattern.permute.xlu0 9
      %426 = vperm.xlu0 %425, %v171
      %v427 = vpop.permute.xlu0 %426
      %v429 = vmul.f32 %v173, %v427
      %v430 = vmul.f32 %v174, %v427
      %v431 = vmul.f32 %v175, %v427
      %v432 = vmul.f32 %v176, %v427
      %437 = vrot.lane.b32.xlu0 %v429, 104
      %v438 = vpop.permute.xlu0 %437
      %439 = vrot.lane.b32.xlu0 %v430, 104
      %v440 = vpop.permute.xlu0 %439
      %441 = vrot.lane.b32.xlu0 %v431, 104
      %v442 = vpop.permute.xlu0 %441
      %443 = vrot.lane.b32.xlu0 %v432, 104
      %v444 = vpop.permute.xlu0 %443
      %vm445 = vcmask 850944
      %v446 = vsel %vm445, %v438, %v440
      %v447 = vsel %vm445, %v440, %v442
      %v448 = vsel %vm445, %v442, %v444
      %v452 = vadd.f32 %v422, %v446
      %v453 = vadd.f32 %v423, %v447
      %v454 = vadd.f32 %v424, %v448
      %455 = vset.pattern.permute.xlu0 10
      %456 = vperm.xlu0 %455, %v171
      %v457 = vpop.permute.xlu0 %456
      %v459 = vmul.f32 %v173, %v457
      %v460 = vmul.f32 %v174, %v457
      %v461 = vmul.f32 %v175, %v457
      %v462 = vmul.f32 %v176, %v457
      %467 = vrot.lane.b32.xlu0 %v459, 88
      %v468 = vpop.permute.xlu0 %467
      %469 = vrot.lane.b32.xlu0 %v460, 88
      %v470 = vpop.permute.xlu0 %469
      %471 = vrot.lane.b32.xlu0 %v461, 88
      %v472 = vpop.permute.xlu0 %471
      %473 = vrot.lane.b32.xlu0 %v462, 88
      %v474 = vpop.permute.xlu0 %473
      %vm475 = vcmask 719872
      %v476 = vsel %vm475, %v468, %v470
      %v477 = vsel %vm475, %v470, %v472
      %v478 = vsel %vm475, %v472, %v474
      %v482 = vadd.f32 %v452, %v476
      %v483 = vadd.f32 %v453, %v477
      %v484 = vadd.f32 %v454, %v478
      %485 = vset.pattern.permute.xlu0 11
      %486 = vperm.xlu0 %485, %v171
      %v487 = vpop.permute.xlu0 %486
      %v489 = vmul.f32 %v173, %v487
      %v490 = vmul.f32 %v174, %v487
      %v491 = vmul.f32 %v175, %v487
      %v492 = vmul.f32 %v176, %v487
      %497 = vrot.lane.b32.xlu0 %v489, 87
      %v498 = vpop.permute.xlu0 %497
      %499 = vrot.lane.b32.xlu0 %v490, 87
      %v500 = vpop.permute.xlu0 %499
      %501 = vrot.lane.b32.xlu0 %v491, 87
      %v502 = vpop.permute.xlu0 %501
      %503 = vrot.lane.b32.xlu0 %v492, 87
      %v504 = vpop.permute.xlu0 %503
      %vm505 = vcmask 711680
      %v506 = vsel %vm505, %v498, %v500
      %v507 = vsel %vm505, %v500, %v502
      %v508 = vsel %vm505, %v502, %v504
      %v512 = vadd.f32 %v482, %v506
      %v513 = vadd.f32 %v483, %v507
      %v514 = vadd.f32 %v484, %v508
      %515 = vset.pattern.permute.xlu0 12
      %516 = vperm.xlu0 %515, %v171
      %v517 = vpop.permute.xlu0 %516
      %v519 = vmul.f32 %v173, %v517
      %v520 = vmul.f32 %v174, %v517
      %v521 = vmul.f32 %v175, %v517
      %v522 = vmul.f32 %v176, %v517
      %527 = vrot.lane.b32.xlu0 %v519, 86
      %v528 = vpop.permute.xlu0 %527
      %529 = vrot.lane.b32.xlu0 %v520, 86
      %v530 = vpop.permute.xlu0 %529
      %531 = vrot.lane.b32.xlu0 %v521, 86
      %v532 = vpop.permute.xlu0 %531
      %533 = vrot.lane.b32.xlu0 %v522, 86
      %v534 = vpop.permute.xlu0 %533
      %vm535 = vcmask 703488
      %v536 = vsel %vm535, %v528, %v530
      %v537 = vsel %vm535, %v530, %v532
      %v538 = vsel %vm535, %v532, %v534
      %v542 = vadd.f32 %v512, %v536
      %v543 = vadd.f32 %v513, %v537
      %v544 = vadd.f32 %v514, %v538
      %545 = vset.pattern.permute.xlu0 13
      %546 = vperm.xlu0 %545, %v171
      %v547 = vpop.permute.xlu0 %546
      %v549 = vmul.f32 %v173, %v547
      %v550 = vmul.f32 %v174, %v547
      %v551 = vmul.f32 %v175, %v547
      %v552 = vmul.f32 %v176, %v547
      %557 = vrot.lane.b32.xlu0 %v549, 85
      %v558 = vpop.permute.xlu0 %557
      %559 = vrot.lane.b32.xlu0 %v550, 85
      %v560 = vpop.permute.xlu0 %559
      %561 = vrot.lane.b32.xlu0 %v551, 85
      %v562 = vpop.permute.xlu0 %561
      %563 = vrot.lane.b32.xlu0 %v552, 85
      %v564 = vpop.permute.xlu0 %563
      %vm565 = vcmask 695296
      %v566 = vsel %vm565, %v558, %v560
      %v567 = vsel %vm565, %v560, %v562
      %v568 = vsel %vm565, %v562, %v564
      %v572 = vadd.f32 %v542, %v566
      %v573 = vadd.f32 %v543, %v567
      %v574 = vadd.f32 %v544, %v568
      %575 = vset.pattern.permute.xlu0 14
      %576 = vperm.xlu0 %575, %v171
      %v577 = vpop.permute.xlu0 %576
      %v579 = vmul.f32 %v173, %v577
      %v580 = vmul.f32 %v174, %v577
      %v581 = vmul.f32 %v175, %v577
      %v582 = vmul.f32 %v176, %v577
      %587 = vrot.lane.b32.xlu0 %v579, 84
      %v588 = vpop.permute.xlu0 %587
      %589 = vrot.lane.b32.xlu0 %v580, 84
      %v590 = vpop.permute.xlu0 %589
      %591 = vrot.lane.b32.xlu0 %v581, 84
      %v592 = vpop.permute.xlu0 %591
      %593 = vrot.lane.b32.xlu0 %v582, 84
      %v594 = vpop.permute.xlu0 %593
      %vm595 = vcmask 687104
      %v596 = vsel %vm595, %v588, %v590
      %v597 = vsel %vm595, %v590, %v592
      %v598 = vsel %vm595, %v592, %v594
      %v602 = vadd.f32 %v572, %v596
      %v603 = vadd.f32 %v573, %v597
      %v604 = vadd.f32 %v574, %v598
      %605 = vset.pattern.permute.xlu0 15
      %606 = vperm.xlu0 %605, %v171
      %v607 = vpop.permute.xlu0 %606
      %v609 = vmul.f32 %v173, %v607
      %v610 = vmul.f32 %v174, %v607
      %v611 = vmul.f32 %v175, %v607
      %v612 = vmul.f32 %v176, %v607
      %617 = vrot.lane.b32.xlu0 %v609, 68
      %v618 = vpop.permute.xlu0 %617
      %619 = vrot.lane.b32.xlu0 %v610, 68
      %v620 = vpop.permute.xlu0 %619
      %621 = vrot.lane.b32.xlu0 %v611, 68
      %v622 = vpop.permute.xlu0 %621
      %623 = vrot.lane.b32.xlu0 %v612, 68
      %v624 = vpop.permute.xlu0 %623
      %vm625 = vcmask 556032
      %v626 = vsel %vm625, %v618, %v620
      %v627 = vsel %vm625, %v620, %v622
      %v628 = vsel %vm625, %v622, %v624
      %v632 = vadd.f32 %v602, %v626
      %v633 = vadd.f32 %v603, %v627
      %v634 = vadd.f32 %v604, %v628
      %635 = vset.pattern.permute.xlu0 16
      %636 = vperm.xlu0 %635, %v171
      %v637 = vpop.permute.xlu0 %636
      %v639 = vmul.f32 %v173, %v637
      %v640 = vmul.f32 %v174, %v637
      %v641 = vmul.f32 %v175, %v637
      %v642 = vmul.f32 %v176, %v637
      %647 = vrot.lane.b32.xlu0 %v639, 67
      %v648 = vpop.permute.xlu0 %647
      %649 = vrot.lane.b32.xlu0 %v640, 67
      %v650 = vpop.permute.xlu0 %649
      %651 = vrot.lane.b32.xlu0 %v641, 67
      %v652 = vpop.permute.xlu0 %651
      %653 = vrot.lane.b32.xlu0 %v642, 67
      %v654 = vpop.permute.xlu0 %653
      %vm655 = vcmask 547840
      %v656 = vsel %vm655, %v648, %v650
      %v657 = vsel %vm655, %v650, %v652
      %v658 = vsel %vm655, %v652, %v654
      %v662 = vadd.f32 %v632, %v656
      %v663 = vadd.f32 %v633, %v657
      %v664 = vadd.f32 %v634, %v658
      %665 = vset.pattern.permute.xlu0 17
      %666 = vperm.xlu0 %665, %v171
      %v667 = vpop.permute.xlu0 %666
      %v669 = vmul.f32 %v173, %v667
      %v670 = vmul.f32 %v174, %v667
      %v671 = vmul.f32 %v175, %v667
      %v672 = vmul.f32 %v176, %v667
      %677 = vrot.lane.b32.xlu0 %v669, 66
      %v678 = vpop.permute.xlu0 %677
      %679 = vrot.lane.b32.xlu0 %v670, 66
      %v680 = vpop.permute.xlu0 %679
      %681 = vrot.lane.b32.xlu0 %v671, 66
      %v682 = vpop.permute.xlu0 %681
      %683 = vrot.lane.b32.xlu0 %v672, 66
      %v684 = vpop.permute.xlu0 %683
      %vm685 = vcmask 539648
      %v686 = vsel %vm685, %v678, %v680
      %v687 = vsel %vm685, %v680, %v682
      %v688 = vsel %vm685, %v682, %v684
      %v692 = vadd.f32 %v662, %v686
      %v693 = vadd.f32 %v663, %v687
      %v694 = vadd.f32 %v664, %v688
      %695 = vset.pattern.permute.xlu0 18
      %696 = vperm.xlu0 %695, %v171
      %v697 = vpop.permute.xlu0 %696
      %v699 = vmul.f32 %v173, %v697
      %v700 = vmul.f32 %v174, %v697
      %v701 = vmul.f32 %v175, %v697
      %v702 = vmul.f32 %v176, %v697
      %707 = vrot.lane.b32.xlu0 %v699, 65
      %v708 = vpop.permute.xlu0 %707
      %709 = vrot.lane.b32.xlu0 %v700, 65
      %v710 = vpop.permute.xlu0 %709
      %711 = vrot.lane.b32.xlu0 %v701, 65
      %v712 = vpop.permute.xlu0 %711
      %713 = vrot.lane.b32.xlu0 %v702, 65
      %v714 = vpop.permute.xlu0 %713
      %vm715 = vcmask 531456
      %v716 = vsel %vm715, %v708, %v710
      %v717 = vsel %vm715, %v710, %v712
      %v718 = vsel %vm715, %v712, %v714
      %v722 = vadd.f32 %v692, %v716
      %v723 = vadd.f32 %v693, %v717
      %v724 = vadd.f32 %v694, %v718
      %725 = vset.pattern.permute.xlu0 19
      %726 = vperm.xlu0 %725, %v171
      %v727 = vpop.permute.xlu0 %726
      %v729 = vmul.f32 %v173, %v727
      %v730 = vmul.f32 %v174, %v727
      %v731 = vmul.f32 %v175, %v727
      %v732 = vmul.f32 %v176, %v727
      %737 = vrot.lane.b32.xlu0 %v729, 64
      %v738 = vpop.permute.xlu0 %737
      %739 = vrot.lane.b32.xlu0 %v730, 64
      %v740 = vpop.permute.xlu0 %739
      %741 = vrot.lane.b32.xlu0 %v731, 64
      %v742 = vpop.permute.xlu0 %741
      %743 = vrot.lane.b32.xlu0 %v732, 64
      %v744 = vpop.permute.xlu0 %743
      %vm745 = vcmask 523264
      %v746 = vsel %vm745, %v738, %v740
      %v747 = vsel %vm745, %v740, %v742
      %v748 = vsel %vm745, %v742, %v744
      %v752 = vadd.f32 %v722, %v746
      %v753 = vadd.f32 %v723, %v747
      %v754 = vadd.f32 %v724, %v748
      %755 = vset.pattern.permute.xlu0 20
      %756 = vperm.xlu0 %755, %v171
      %v757 = vpop.permute.xlu0 %756
      %v759 = vmul.f32 %v173, %v757
      %v760 = vmul.f32 %v174, %v757
      %v761 = vmul.f32 %v175, %v757
      %v762 = vmul.f32 %v176, %v757
      %767 = vrot.lane.b32.xlu0 %v759, 48
      %v768 = vpop.permute.xlu0 %767
      %769 = vrot.lane.b32.xlu0 %v760, 48
      %v770 = vpop.permute.xlu0 %769
      %771 = vrot.lane.b32.xlu0 %v761, 48
      %v772 = vpop.permute.xlu0 %771
      %773 = vrot.lane.b32.xlu0 %v762, 48
      %v774 = vpop.permute.xlu0 %773
      %vm775 = vcmask 392192
      %v776 = vsel %vm775, %v768, %v770
      %v777 = vsel %vm775, %v770, %v772
      %v778 = vsel %vm775, %v772, %v774
      %v782 = vadd.f32 %v752, %v776
      %v783 = vadd.f32 %v753, %v777
      %v784 = vadd.f32 %v754, %v778
      %785 = vset.pattern.permute.xlu0 21
      %786 = vperm.xlu0 %785, %v171
      %v787 = vpop.permute.xlu0 %786
      %v789 = vmul.f32 %v173, %v787
      %v790 = vmul.f32 %v174, %v787
      %v791 = vmul.f32 %v175, %v787
      %v792 = vmul.f32 %v176, %v787
      %797 = vrot.lane.b32.xlu0 %v789, 47
      %v798 = vpop.permute.xlu0 %797
      %799 = vrot.lane.b32.xlu0 %v790, 47
      %v800 = vpop.permute.xlu0 %799
      %801 = vrot.lane.b32.xlu0 %v791, 47
      %v802 = vpop.permute.xlu0 %801
      %803 = vrot.lane.b32.xlu0 %v792, 47
      %v804 = vpop.permute.xlu0 %803
      %vm805 = vcmask 384000
      %v806 = vsel %vm805, %v798, %v800
      %v807 = vsel %vm805, %v800, %v802
      %v808 = vsel %vm805, %v802, %v804
      %v812 = vadd.f32 %v782, %v806
      %v813 = vadd.f32 %v783, %v807
      %v814 = vadd.f32 %v784, %v808
      %815 = vset.pattern.permute.xlu0 22
      %816 = vperm.xlu0 %815, %v171
      %v817 = vpop.permute.xlu0 %816
      %v819 = vmul.f32 %v173, %v817
      %v820 = vmul.f32 %v174, %v817
      %v821 = vmul.f32 %v175, %v817
      %v822 = vmul.f32 %v176, %v817
      %827 = vrot.lane.b32.xlu0 %v819, 46
      %v828 = vpop.permute.xlu0 %827
      %829 = vrot.lane.b32.xlu0 %v820, 46
      %v830 = vpop.permute.xlu0 %829
      %831 = vrot.lane.b32.xlu0 %v821, 46
      %v832 = vpop.permute.xlu0 %831
      %833 = vrot.lane.b32.xlu0 %v822, 46
      %v834 = vpop.permute.xlu0 %833
      %vm835 = vcmask 375808
      %v836 = vsel %vm835, %v828, %v830
      %v837 = vsel %vm835, %v830, %v832
      %v838 = vsel %vm835, %v832, %v834
      %v842 = vadd.f32 %v812, %v836
      %v843 = vadd.f32 %v813, %v837
      %v844 = vadd.f32 %v814, %v838
      %845 = vset.pattern.permute.xlu0 23
      %846 = vperm.xlu0 %845, %v171
      %v847 = vpop.permute.xlu0 %846
      %v849 = vmul.f32 %v173, %v847
      %v850 = vmul.f32 %v174, %v847
      %v851 = vmul.f32 %v175, %v847
      %v852 = vmul.f32 %v176, %v847
      %857 = vrot.lane.b32.xlu0 %v849, 45
      %v858 = vpop.permute.xlu0 %857
      %859 = vrot.lane.b32.xlu0 %v850, 45
      %v860 = vpop.permute.xlu0 %859
      %861 = vrot.lane.b32.xlu0 %v851, 45
      %v862 = vpop.permute.xlu0 %861
      %863 = vrot.lane.b32.xlu0 %v852, 45
      %v864 = vpop.permute.xlu0 %863
      %vm865 = vcmask 367616
      %v866 = vsel %vm865, %v858, %v860
      %v867 = vsel %vm865, %v860, %v862
      %v868 = vsel %vm865, %v862, %v864
      %v872 = vadd.f32 %v842, %v866
      %v873 = vadd.f32 %v843, %v867
      %v874 = vadd.f32 %v844, %v868
      %875 = vset.pattern.permute.xlu0 24
      %876 = vperm.xlu0 %875, %v171
      %v877 = vpop.permute.xlu0 %876
      %v879 = vmul.f32 %v173, %v877
      %v880 = vmul.f32 %v174, %v877
      %v881 = vmul.f32 %v175, %v877
      %v882 = vmul.f32 %v176, %v877
      %887 = vrot.lane.b32.xlu0 %v879, 44
      %v888 = vpop.permute.xlu0 %887
      %889 = vrot.lane.b32.xlu0 %v880, 44
      %v890 = vpop.permute.xlu0 %889
      %891 = vrot.lane.b32.xlu0 %v881, 44
      %v892 = vpop.permute.xlu0 %891
      %893 = vrot.lane.b32.xlu0 %v882, 44
      %v894 = vpop.permute.xlu0 %893
      %vm895 = vcmask 359424
      %v896 = vsel %vm895, %v888, %v890
      %v897 = vsel %vm895, %v890, %v892
      %v898 = vsel %vm895, %v892, %v894
      %v902 = vadd.f32 %v872, %v896
      %v903 = vadd.f32 %v873, %v897
      %v904 = vadd.f32 %v874, %v898
      %906 = vset.pattern.permute.xlu0 8
      %907 = vperm.xlu0 %906, %v172
      %v908 = vpop.permute.xlu0 %907
      %vm910 = vcmask 64512
      %v911 = vsel %vm910, %v172, 0
      %913 = vmatprep.subr.mxu0 %v903
      %914 = vmatpush1.msra.mxu0 %v902
      %915 = vmatprep.subr.mxu0 0.0
      %916 = vmatpush1.msra.mxu0 0.0
      %917 = vmatprep.subr.mxu0 0.0
      %918 = vmatpush1.msra.mxu0 0.0
      %919 = vmatprep.subr.mxu0 0.0
      %920 = vmatpush1.msra.mxu0 0.0
      %921 = vmatprep.subr.mxu0 0.0
      %922 = vmatpush1.msra.mxu0 0.0
      %923 = vmatprep.subr.mxu0 0.0
      %924 = vmatpush1.msra.mxu0 0.0
      %925 = vmatprep.subr.mxu0 0.0
      %926 = vmatpush1.msra.mxu0 0.0
      %927 = vmatprep.subr.mxu0 0.0
      %928 = vmatpush1.msra.mxu0 0.0
      %929 = vmatprep.subr.mxu0 0.0
      %930 = vmatpush1.msra.mxu0 0.0
      %931 = vmatprep.subr.mxu0 0.0
      %932 = vmatpush1.msra.mxu0 0.0
      %933 = vmatprep.subr.mxu0 0.0
      %934 = vmatpush1.msra.mxu0 0.0
      %935 = vmatprep.subr.mxu0 0.0
      %936 = vmatpush1.msra.mxu0 0.0
      %937 = vmatprep.subr.mxu0 0.0
      %938 = vmatpush1.msra.mxu0 0.0
      %939 = vmatprep.subr.mxu0 0.0
      %940 = vmatpush1.msra.mxu0 0.0
      %941 = vmatprep.subr.mxu0 0.0
      %942 = vmatpush1.msra.mxu0 0.0
      %943 = vmatprep.subr.mxu0 0.0
      %944 = vmatpush1.msra.mxu0 0.0
      %945 = vmatprep.subr.mxu0 0.0
      %946 = vmatpush1.msra.mxu0 0.0
      %947 = vmatprep.subr.mxu0 0.0
      %948 = vmatpush1.msra.mxu0 0.0
      %949 = vmatprep.subr.mxu0 0.0
      %950 = vmatpush1.msra.mxu0 0.0
      %951 = vmatprep.subr.mxu0 0.0
      %952 = vmatpush1.msra.mxu0 0.0
      %953 = vmatprep.subr.mxu0 0.0
      %954 = vmatpush1.msra.mxu0 0.0
      %955 = vmatprep.subr.mxu0 0.0
      %956 = vmatpush1.msra.mxu0 0.0
      %957 = vmatprep.subr.mxu0 0.0
      %958 = vmatpush1.msra.mxu0 0.0
      %959 = vmatprep.subr.mxu0 0.0
      %960 = vmatpush1.msra.mxu0 0.0
      %961 = vmatprep.subr.mxu0 0.0
      %962 = vmatpush1.msra.mxu0 0.0
      %963 = vmatprep.subr.mxu0 0.0
      %964 = vmatpush1.msra.mxu0 0.0
      %965 = vmatprep.subr.mxu0 0.0
      %966 = vmatpush1.msra.mxu0 0.0
      %967 = vmatprep.subr.mxu0 0.0
      %968 = vmatpush1.msra.mxu0 0.0
      %969 = vmatprep.subr.mxu0 0.0
      %970 = vmatpush1.msra.mxu0 0.0
      %971 = vmatprep.subr.mxu0 0.0
      %972 = vmatpush1.msra.mxu0 0.0
      %973 = vmatprep.subr.mxu0 0.0
      %974 = vmatpush1.msra.mxu0 0.0
      %975 = vmatprep.subr.mxu0 0.0
      %976 = vmatpush1.msra.mxu0 0.0
      %977 = vmatprep.mubr.f32.mxu0 0.0
      %978 = vmatmul.mubr.f32.gmra.mrb[0].mxu0 %v911
      %v979 = vpop.f32.mrb[0].mxu0
      %v980 = vadd.f32 %v908, %v979
      %v981 = vpop.f32.mrb[0].mxu0
      %v982 = vadd.f32 %v908, %v981
      %983 = vdwg.mxu0
      %984 = vmatprep.subr.mxu0 0.0
      %985 = vmatpush1.msra.mxu0 %v904
      %986 = vmatprep.subr.mxu0 0.0
      %987 = vmatpush1.msra.mxu0 0.0
      %988 = vmatprep.subr.mxu0 0.0
      %989 = vmatpush1.msra.mxu0 0.0
      %990 = vmatprep.subr.mxu0 0.0
      %991 = vmatpush1.msra.mxu0 0.0
      %992 = vmatprep.subr.mxu0 0.0
      %993 = vmatpush1.msra.mxu0 0.0
      %994 = vmatprep.subr.mxu0 0.0
      %995 = vmatpush1.msra.mxu0 0.0
      %996 = vmatprep.subr.mxu0 0.0
      %997 = vmatpush1.msra.mxu0 0.0
      %998 = vmatprep.subr.mxu0 0.0
      %999 = vmatpush1.msra.mxu0 0.0
      %1000 = vmatprep.subr.mxu0 0.0
      %1001 = vmatpush1.msra.mxu0 0.0
      %1002 = vmatprep.subr.mxu0 0.0
      %1003 = vmatpush1.msra.mxu0 0.0
      %1004 = vmatprep.subr.mxu0 0.0
      %1005 = vmatpush1.msra.mxu0 0.0
      %1006 = vmatprep.subr.mxu0 0.0
      %1007 = vmatpush1.msra.mxu0 0.0
      %1008 = vmatprep.subr.mxu0 0.0
      %1009 = vmatpush1.msra.mxu0 0.0
      %1010 = vmatprep.subr.mxu0 0.0
      %1011 = vmatpush1.msra.mxu0 0.0
      %1012 = vmatprep.subr.mxu0 0.0
      %1013 = vmatpush1.msra.mxu0 0.0
      %1014 = vmatprep.subr.mxu0 0.0
      %1015 = vmatpush1.msra.mxu0 0.0
      %1016 = vmatprep.subr.mxu0 0.0
      %1017 = vmatpush1.msra.mxu0 0.0
      %1018 = vmatprep.subr.mxu0 0.0
      %1019 = vmatpush1.msra.mxu0 0.0
      %1020 = vmatprep.subr.mxu0 0.0
      %1021 = vmatpush1.msra.mxu0 0.0
      %1022 = vmatprep.subr.mxu0 0.0
      %1023 = vmatpush1.msra.mxu0 0.0
      %1024 = vmatprep.subr.mxu0 0.0
      %1025 = vmatpush1.msra.mxu0 0.0
      %1026 = vmatprep.subr.mxu0 0.0
      %1027 = vmatpush1.msra.mxu0 0.0
      %1028 = vmatprep.subr.mxu0 0.0
      %1029 = vmatpush1.msra.mxu0 0.0
      %1030 = vmatprep.subr.mxu0 0.0
      %1031 = vmatpush1.msra.mxu0 0.0
      %1032 = vmatprep.subr.mxu0 0.0
      %1033 = vmatpush1.msra.mxu0 0.0
      %1034 = vmatprep.subr.mxu0 0.0
      %1035 = vmatpush1.msra.mxu0 0.0
      %1036 = vmatprep.subr.mxu0 0.0
      %1037 = vmatpush1.msra.mxu0 0.0
      %1038 = vmatprep.subr.mxu0 0.0
      %1039 = vmatpush1.msra.mxu0 0.0
      %1040 = vmatprep.subr.mxu0 0.0
      %1041 = vmatpush1.msra.mxu0 0.0
      %1042 = vmatprep.subr.mxu0 0.0
      %1043 = vmatpush1.msra.mxu0 0.0
      %1044 = vmatprep.subr.mxu0 0.0
      %1045 = vmatpush1.msra.mxu0 0.0
      %1046 = vmatprep.subr.mxu0 0.0
      %1047 = vmatpush1.msra.mxu0 0.0
      %1048 = vmatprep.mubr.f32.mxu0 0.0
      %1049 = vmatmul.mubr.f32.gmra.mrb[0].mxu0 %v911
      %v1050 = vpop.f32.mrb[0].mxu0
      %v1051 = vadd.f32 %v908, %v1050
      %v1052 = vpop.f32.mrb[0].mxu0
      %1053 = vdwg.mxu0
      %1058 = vrot.lane.b32.xlu0 %v173, 86
      %v1059 = vpop.permute.xlu0 %1058
      %1060 = vrot.lane.b32.xlu0 %v174, 86
      %v1061 = vpop.permute.xlu0 %1060
      %1062 = vrot.lane.b32.xlu0 %v175, 86
      %v1063 = vpop.permute.xlu0 %1062
      %1064 = vrot.lane.b32.xlu0 %v176, 86
      %v1065 = vpop.permute.xlu0 %1064
      %v1066 = vsel %vm535, %v1059, %v1061
      %v1067 = vsel %vm535, %v1061, %v1063
      %v1068 = vsel %vm535, %v1063, %v1065
      %v1072 = vadd.f32 %v980, %v1066
      %v1073 = vadd.f32 %v982, %v1067
      %v1074 = vadd.f32 %v1051, %v1068
      %v1075 = vmax.f32 %v1072, 0.0
      %v1076 = vmax.f32 %v1073, 0.0
      %v1077 = vmax.f32 %v1074, 0.0
      %1078 = vst [vmem:[%s170] sm:$0xff] %v1075
      %1079 = vst [vmem:[%s170 + $0x8] sm:$0xff] %v1076
      %1080 = vst [vmem:[%s170 + $0x10] sm:$0xff] %v1077
      %p1081 = scmp.lt.s32.totalorder %s14, 1
      %s1082 = scalar_select %p1081, %s14, 1
      %s1083 = smul.addr %s1082, 3
      %s1084 = smul.addr %s1083, 8
      %s1085 = scalar_lea.vmem %s3, %s1084
      // Predicated region
      $region33: #{res_module_forward.1} parent=31 // pred_check
        %p1086 = pneg %p100
      $region34: #{res_module_forward.1} parent=31 // pred_check_branch
        %1088 = sbr.rel (%p1086) target = $region36
      $region35: #{res_module_forward.1} parent=31 // pred_region
        _
      $region36: #{res_module_forward.1} parent=31 // pred_fallthru
        _
    $region32: #{res_module_forward.1} parent=5 // pred_fallthru
      _
    %p1089 = scmp.le.s32.totalorder 2, %s9
    // Predicated region
    $region37: #{res_module_forward.1} parent=5 // pred_check
      %p1090 = pneg %p1089
    $region38: #{res_module_forward.1} parent=5 // pred_check_branch
      %1092 = sbr.rel (%p1090) target = $region40
    $region39: #{res_module_forward.1} parent=5 // pred_region
      %s1093 = ssub.s32 %s9, 2
      // Predicated region
      $region41: #{res_module_forward.1} parent=39 // pred_check
        %p1094 = pneg %p106
      $region42: #{res_module_forward.1} parent=39 // pred_check_branch
        %1096 = sbr.rel (%p1094) target = $region44
      $region43: #{res_module_forward.1} parent=39 // pred_region
        %p1097 = scmp.lt.s32.totalorder %s15, 1
        %s1098 = scalar_select %p1097, %s15, 1
        %s1099 = smul.addr %s1098, 3
        %s1100 = smul.addr %s1099, 8
        %s1101 = scalar_lea.vmem %s3, %s1100
      $region44: #{res_module_forward.1} parent=39 // pred_fallthru
        _
    $region40: #{res_module_forward.1} parent=5 // pred_fallthru
      _
  $region6: #{res_module_forward.1} parent=0 // loop_footer
    %s13 = sadd.s32 1, %s9
  $region7: #{res_module_forward.1} parent=0 // loop_footer_branch
    %8 = sbr.rel target = $region3
  $region8: #{res_module_forward.1} parent=0 // loop_exit
    _

</llo_original>
